<compile_context>
chip_gen: v7x
topology: tpu7x:2x2x1
jax: 0.10.0
libtpu: 0.0.40
codegen_flags: <defaults>
</compile_context>

<pallas_src>
import jax
import jax.numpy as jnp
import numpy as np
from jax.experimental import pallas as pl
from jax.experimental.pallas import tpu as pltpu


def _round_up(x, m):
    return (x + m - 1) // m * m


def _make_kernel(M, C, Cp, TB):
    def kernel(flags_ref, x_ref, w_ref, b_ref, o_ref):
        # One lane-dense MXU matmul computes all M members' logits at once:
        # [TB, H] @ [H, M*Cp] -> [TB, M*Cp]  (f32 accumulate).
        pred_all = jnp.dot(x_ref[...], w_ref[...],
                           preferred_element_type=jnp.float32) + b_ref[...]

        # Lanes >= C inside each model's Cp-wide slab are zero padding
        # (W and b were zero-padded), so mask them out of the softmax denom.
        lane = jax.lax.broadcasted_iota(jnp.int32, (TB, Cp), 1)
        valid = lane < C

        acc = jnp.zeros((TB, Cp), jnp.float32)
        for m in range(M):  # static unroll; M is small
            pred = pred_all[:, m * Cp:(m + 1) * Cp]          # 128-aligned slice
            # Batch-global PyTorch predicate, precomputed (scalar prefetch).
            needs_softmax = flags_ref[m] != 0
            # Padded columns are exactly 0; including them in the max only
            # changes the (cancelling) shift constant.
            mx = jnp.max(pred, axis=1, keepdims=True)
            e = jnp.where(valid, jnp.exp(pred - mx), 0.0)
            denom = jnp.sum(e, axis=1, keepdims=True)
            sm = e * pl.reciprocal(denom)                    # exact (1e-5 tol)
            acc = acc + jnp.where(needs_softmax, sm, pred)

        o_ref[...] = acc * (1.0 / M)

    return kernel


def ensemble_forward(x, w, b):
    """x: [B, H] f32, w: [M, H, C] f32, b: [M, C] f32 -> [B, C] f32."""
    B, H = x.shape
    M, _, C = w.shape

    Cp = _round_up(max(C, 128), 128)            # lane-dense class dim
    TB = 128 if B >= 128 else _round_up(B, 8)   # batch tile (multiple of 8)
    Bp = _round_up(B, TB)

    # Fuse + pad weights: [M, H, C] -> [H, M*Cp] so one matmul serves all
    # members; per-model slab m occupies columns [m*Cp, (m+1)*Cp).
    w_p = jnp.pad(w, ((0, 0), (0, 0), (0, Cp - C)))
    w_p = jnp.transpose(w_p, (1, 0, 2)).reshape(H, M * Cp)
    b_p = jnp.pad(b, ((0, 0), (0, Cp - C))).reshape(1, M * Cp)
    x_p = jnp.pad(x, ((0, Bp - B), (0, 0)))

    # Batch-global softmax predicate per model (matches PyTorch's .any() over
    # the WHOLE batch even when the kernel tiles B). Uses the identity
    # sum_c(x W_m + b_m) = x @ W_m.sum(-1) + b_m.sum()  -> tiny [B,H]@[H,M].
    row_sums = x @ jnp.sum(w, axis=-1).T + jnp.sum(b, axis=-1)            # [B, M]
    flags = jnp.any(jnp.abs(row_sums - 1.0) > 1e-4, axis=0).astype(jnp.int32)

    kernel = _make_kernel(M, C, Cp, TB)

    out_p = pl.pallas_call(
        kernel,
        out_shape=jax.ShapeDtypeStruct((Bp, Cp), jnp.float32),
        grid_spec=pltpu.PrefetchScalarGridSpec(
            num_scalar_prefetch=1,
            grid=(Bp // TB,),
            in_specs=[
                # per-tile batch rows
                pl.BlockSpec((TB, H), lambda i, flags: (i, 0)),
                # fused (padded) weights / bias, resident for all tiles
                pl.BlockSpec((H, M * Cp), lambda i, flags: (0, 0)),
                pl.BlockSpec((1, M * Cp), lambda i, flags: (0, 0)),
            ],
            out_specs=pl.BlockSpec((TB, Cp), lambda i, flags: (i, 0)),
        ),
        compiler_params=pltpu.CompilerParams(
            dimension_semantics=("parallel",)),
    )(flags, x_p, w_p, b_p)

    return out_p[:B, :C]


def ensemble_reference(x, w, b):
    """Pure-JAX reference mirroring the PyTorch forward semantics."""
    preds = []
    for m in range(w.shape[0]):
        pred = x @ w[m] + b[m]
        needs = jnp.any(jnp.abs(pred.sum(axis=1) - 1.0) > 1e-4)
        pred = jnp.where(needs, jax.nn.softmax(pred, axis=1), pred)
        preds.append(pred)
    return jnp.stack(preds, 0).mean(0)


if __name__ == "__main__":
    # Small, deterministic shapes: 3 ensemble members, batch=8, hidden=32, 16 classes.
    M, B, H, C = 3, 8, 32, 16
    key = jax.random.PRNGKey(0)
    kx, kw, kb = jax.random.split(key, 3)

    x = jax.random.normal(kx, (B, H), dtype=jnp.float32)
    w = jax.random.normal(kw, (M, H, C), dtype=jnp.float32) * 0.1
    b = jax.random.normal(kb, (M, C), dtype=jnp.float32) * 0.1

    out = ensemble_forward(x, w, b)
    out = jax.block_until_ready(out)

    ref = ensemble_reference(x, w, b)
    assert out.shape == (B, C)
    assert np.allclose(np.asarray(out), np.asarray(ref), atol=1e-5, rtol=1e-5)

    print("KERNEL_OK")
</pallas_src>

<mosaic_0001>
module attributes {stable_mosaic.version = 11 : i64} {
  func.func @kernel(%arg0: i32, %arg1: memref<3xi32, #tpu.memory_space<smem>>, %arg2: memref<8x32xf32, #tpu.memory_space<vmem>>, %arg3: memref<32x384xf32, #tpu.memory_space<vmem>>, %arg4: memref<1x384xf32, #tpu.memory_space<vmem>>, %arg5: memref<8x128xf32, #tpu.memory_space<vmem>>) attributes {dimension_semantics = [#tpu.dimension_semantics<parallel>], iteration_bounds = array<i64: 1>, scalar_prefetch = 1 : i64, scratch_operands = 0 : i64, tpu.core_type = #tpu.core_type<tc>, window_params = [{transform_indices = @transform_0, window_bounds = array<i64: 8, 32>}, {pipeline_mode = #tpu.pipeline_mode<synchronous>, transform_indices = @transform_1, window_bounds = array<i64: 32, 384>}, {pipeline_mode = #tpu.pipeline_mode<synchronous>, transform_indices = @transform_2, window_bounds = array<i64: 1, 384>}, {transform_indices = @transform_3, window_bounds = array<i64: 8, 128>}]} {
    %c0 = arith.constant 0 : index
    %c0_0 = arith.constant 0 : index
    %0 = vector.load %arg2[%c0, %c0_0] : memref<8x32xf32, #tpu.memory_space<vmem>>, vector<8x32xf32>
    %c0_1 = arith.constant 0 : index
    %c0_2 = arith.constant 0 : index
    %1 = vector.load %arg3[%c0_1, %c0_2] : memref<32x384xf32, #tpu.memory_space<vmem>>, vector<32x384xf32>
    %cst = arith.constant dense<0.000000e+00> : vector<8x384xf32>
    %2 = tpu.matmul %0, %1, %cst {dimension_numbers = #tpu.dot_dimension_numbers<[1], [0], [0], [1], [0, 0, 1, 1], [], []>} : vector<8x32xf32>, vector<32x384xf32>, vector<8x384xf32> -> vector<8x384xf32>
    %c0_3 = arith.constant 0 : index
    %c0_4 = arith.constant 0 : index
    %3 = vector.load %arg4[%c0_3, %c0_4] : memref<1x384xf32, #tpu.memory_space<vmem>>, vector<1x384xf32>
    %4 = vector.broadcast %3 : vector<1x384xf32> to vector<8x384xf32>
    %5 = arith.addf %2, %4 : vector<8x384xf32>
    %6 = tpu.iota {dimensions = array<i32: 1>} : vector<8x128xi32>
    %c16_i32 = arith.constant 16 : i32
    %7 = vector.broadcast %c16_i32 : i32 to vector<8x128xi32>
    %8 = arith.cmpi slt, %6, %7 : vector<8x128xi32>
    %cst_5 = arith.constant 0.000000e+00 : f32
    %9 = vector.broadcast %cst_5 : f32 to vector<8x128xf32>
    %10 = vector.extract_strided_slice %5 {offsets = [0, 0], sizes = [8, 128], strides = [1, 1]} : vector<8x384xf32> to vector<8x128xf32>
    %c0_6 = arith.constant 0 : index
    %11 = memref.load %arg1[%c0_6] : memref<3xi32, #tpu.memory_space<smem>>
    %c0_i32 = arith.constant 0 : i32
    %12 = arith.cmpi ne, %11, %c0_i32 : i32
    %cst_7 = arith.constant dense<0xFF800000> : vector<8xf32>
    %13 = vector.multi_reduction <maximumf>, %10, %cst_7 [1] : vector<8x128xf32> to vector<8xf32>
    %14 = vector.shape_cast %13 : vector<8xf32> to vector<8x1xf32>
    %15 = vector.broadcast %14 : vector<8x1xf32> to vector<8x128xf32>
    %16 = arith.subf %10, %15 : vector<8x128xf32>
    %17 = math.exp %16 : vector<8x128xf32>
    %cst_8 = arith.constant 0.000000e+00 : f32
    %18 = vector.broadcast %cst_8 : f32 to vector<8x128xf32>
    %19 = arith.select %8, %17, %18 : vector<8x128xi1>, vector<8x128xf32>
    %cst_9 = arith.constant dense<0.000000e+00> : vector<8xf32>
    %20 = vector.multi_reduction <add>, %19, %cst_9 [1] : vector<8x128xf32> to vector<8xf32>
    %21 = vector.shape_cast %20 : vector<8xf32> to vector<8x1xf32>
    %22 = tpu.reciprocal %21 : vector<8x1xf32> -> vector<8x1xf32>
    %23 = vector.broadcast %22 : vector<8x1xf32> to vector<8x128xf32>
    %24 = arith.mulf %19, %23 : vector<8x128xf32>
    %25 = arith.select %12, %24, %10 : vector<8x128xf32>
    %26 = arith.addf %9, %25 : vector<8x128xf32>
    %27 = vector.extract_strided_slice %5 {offsets = [0, 128], sizes = [8, 128], strides = [1, 1]} : vector<8x384xf32> to vector<8x128xf32>
    %c1 = arith.constant 1 : index
    %28 = memref.load %arg1[%c1] : memref<3xi32, #tpu.memory_space<smem>>
    %c0_i32_10 = arith.constant 0 : i32
    %29 = arith.cmpi ne, %28, %c0_i32_10 : i32
    %cst_11 = arith.constant dense<0xFF800000> : vector<8xf32>
    %30 = vector.multi_reduction <maximumf>, %27, %cst_11 [1] : vector<8x128xf32> to vector<8xf32>
    %31 = vector.shape_cast %30 : vector<8xf32> to vector<8x1xf32>
    %32 = vector.broadcast %31 : vector<8x1xf32> to vector<8x128xf32>
    %33 = arith.subf %27, %32 : vector<8x128xf32>
    %34 = math.exp %33 : vector<8x128xf32>
    %cst_12 = arith.constant 0.000000e+00 : f32
    %35 = vector.broadcast %cst_12 : f32 to vector<8x128xf32>
    %36 = arith.select %8, %34, %35 : vector<8x128xi1>, vector<8x128xf32>
    %cst_13 = arith.constant dense<0.000000e+00> : vector<8xf32>
    %37 = vector.multi_reduction <add>, %36, %cst_13 [1] : vector<8x128xf32> to vector<8xf32>
    %38 = vector.shape_cast %37 : vector<8xf32> to vector<8x1xf32>
    %39 = tpu.reciprocal %38 : vector<8x1xf32> -> vector<8x1xf32>
    %40 = vector.broadcast %39 : vector<8x1xf32> to vector<8x128xf32>
    %41 = arith.mulf %36, %40 : vector<8x128xf32>
    %42 = arith.select %29, %41, %27 : vector<8x128xf32>
    %43 = arith.addf %26, %42 : vector<8x128xf32>
    %44 = vector.extract_strided_slice %5 {offsets = [0, 256], sizes = [8, 128], strides = [1, 1]} : vector<8x384xf32> to vector<8x128xf32>
    %c2 = arith.constant 2 : index
    %45 = memref.load %arg1[%c2] : memref<3xi32, #tpu.memory_space<smem>>
    %c0_i32_14 = arith.constant 0 : i32
    %46 = arith.cmpi ne, %45, %c0_i32_14 : i32
    %cst_15 = arith.constant dense<0xFF800000> : vector<8xf32>
    %47 = vector.multi_reduction <maximumf>, %44, %cst_15 [1] : vector<8x128xf32> to vector<8xf32>
    %48 = vector.shape_cast %47 : vector<8xf32> to vector<8x1xf32>
    %49 = vector.broadcast %48 : vector<8x1xf32> to vector<8x128xf32>
    %50 = arith.subf %44, %49 : vector<8x128xf32>
    %51 = math.exp %50 : vector<8x128xf32>
    %cst_16 = arith.constant 0.000000e+00 : f32
    %52 = vector.broadcast %cst_16 : f32 to vector<8x128xf32>
    %53 = arith.select %8, %51, %52 : vector<8x128xi1>, vector<8x128xf32>
    %cst_17 = arith.constant dense<0.000000e+00> : vector<8xf32>
    %54 = vector.multi_reduction <add>, %53, %cst_17 [1] : vector<8x128xf32> to vector<8xf32>
    %55 = vector.shape_cast %54 : vector<8xf32> to vector<8x1xf32>
    %56 = tpu.reciprocal %55 : vector<8x1xf32> -> vector<8x1xf32>
    %57 = vector.broadcast %56 : vector<8x1xf32> to vector<8x128xf32>
    %58 = arith.mulf %53, %57 : vector<8x128xf32>
    %59 = arith.select %46, %58, %44 : vector<8x128xf32>
    %60 = arith.addf %43, %59 : vector<8x128xf32>
    %cst_18 = arith.constant 0.333333343 : f32
    %61 = vector.broadcast %cst_18 : f32 to vector<8x128xf32>
    %62 = arith.mulf %60, %61 : vector<8x128xf32>
    %c0_19 = arith.constant 0 : index
    %c0_20 = arith.constant 0 : index
    %63 = vector.load %arg5[%c0_19, %c0_20] : memref<8x128xf32, #tpu.memory_space<vmem>>, vector<8x128xf32>
    tpu.vector_store %arg5[%c0_19, %c0_20], %62 {strides = array<i32>} : memref<8x128xf32, #tpu.memory_space<vmem>>, vector<8x128xf32>,
    return
  }
  func.func @transform_0(%arg0: i32, %arg1: memref<3xi32, #tpu.memory_space<smem>>) -> (i32, i32) {
    %c0_i32 = arith.constant 0 : i32
    %c0_i32_0 = arith.constant 0 : i32
    return %arg0, %c0_i32 : i32, i32
  }
  func.func @transform_1(%arg0: i32, %arg1: memref<3xi32, #tpu.memory_space<smem>>) -> (i32, i32) {
    %c0_i32 = arith.constant 0 : i32
    %c0_i32_0 = arith.constant 0 : i32
    %c0_i32_1 = arith.constant 0 : i32
    return %c0_i32, %c0_i32_0 : i32, i32
  }
  func.func @transform_2(%arg0: i32, %arg1: memref<3xi32, #tpu.memory_space<smem>>) -> (i32, i32) {
    %c0_i32 = arith.constant 0 : i32
    %c0_i32_0 = arith.constant 0 : i32
    %c0_i32_1 = arith.constant 0 : i32
    return %c0_i32, %c0_i32_0 : i32, i32
  }
  func.func @transform_3(%arg0: i32, %arg1: memref<3xi32, #tpu.memory_space<smem>>) -> (i32, i32) {
    %c0_i32 = arith.constant 0 : i32
    %c0_i32_0 = arith.constant 0 : i32
    return %arg0, %c0_i32 : i32, i32
  }
}

</mosaic_0001>

<llo_original>
// kernel: tpu_custom_call.1
$region0: #{tpu_custom_call.1}
  #allocation0 [shape = 'u32[]', space=smem, size = 0x4, offset = 0x4, fixed_abs, tag = 'smem constant byte address 0x4 - core index']
  #allocation1 [shape = 'u32[144,128]{1,0:T(1,128)}', space=vmem, size = 0x12000, scoped, tag = 'internal scratch']
  #allocation2 [shape = 's32[1]{0}', space=sflag, size = 0x4, scoped, tag = 'scoped memory for tpu_custom_call.1']
  #allocation3 [shape = 'u8[512]{0}', space=smem, size = 0x200, scoped, tag = 'prefetched SMEM operand 0']
  %s0 = inlined_call_operand.hbm [shape: s32[3], index: 0, kind: input, shape index: {}]
  %s1 = inlined_call_operand.hbm [shape: f32[8,32], index: 1, kind: input, shape index: {}]
  %s2 = inlined_call_operand.hbm [shape: f32[32,384], index: 2, kind: input, shape index: {}]
  %s3 = inlined_call_operand.vmem [shape: f32[1,384], index: 3, kind: input, shape index: {}]
  %s4 = inlined_call_operand.hbm [shape: f32[8,128], index: 4, kind: output, shape index: {}]
  %s5 = sld [smem:[#allocation0]]
  $region30: #{tpu_custom_call.1} parent=0
    _
  %s7 = ssub.s32 1, %s5
  %s8 = scalar_select 0, %s7, %s5
  %10 = dma.hbm_to_smem %s0, 16, [#allocation3], [#allocation2]
  %11 = dma.done [#allocation2], 16
  %12 = sfence
  $region1: #{tpu_custom_call.1} parent=0
    #allocation4 [shape = 'u8[4096]{0}', space=vmem, size = 0x1000, scoped, tag = 'input window, operand 1, single buffered']
    #allocation5 [shape = 's32[1]{0}', space=sflag, size = 0x4, scoped, tag = 'scoped memory for tpu_custom_call.1']
    #allocation6 [shape = 's32[1]{0}', space=sflag, size = 0x4, scoped, tag = 'scoped memory for tpu_custom_call.1']
    #allocation7 [shape = 'u8[49152]{0}', space=vmem, size = 0xc000, scoped, tag = 'input window, operand 2, single buffered']
    #allocation8 [shape = 's32[1]{0}', space=sflag, size = 0x4, scoped, tag = 'scoped memory for tpu_custom_call.1']
    #allocation9 [shape = 'u8[4096]{0}', space=vmem, size = 0x1000, scoped, tag = 'output window, operand 0, single buffered']
    %13 = vsyncpa [#allocation5], 0
    %14 = vsyncpa [#allocation8], 0
    %15 = vsyncpa [#allocation6], 0
    // Predicated region
    $region2: #{tpu_custom_call.1} parent=1 // pred_check
      _
    $region3: #{tpu_custom_call.1} parent=1 // pred_check_branch
      %17 = sbr.rel (0) target = $region5
    $region4: #{tpu_custom_call.1} parent=1 // pred_region
      %s19 = ssub.s32 128, 128
      %20 = vsyncadd [#allocation5], %s19
      %s22 = sshll.u32 [#allocation4], 4
      %s23 = int_to_ptr.vmem [resolvable:$true] %s22
      %25 = dma.hbm_to_vmem [thread:$0]  %s1, 128, %s23, [#allocation5]
    $region5: #{tpu_custom_call.1} parent=1 // pred_fallthru
      _
    // Predicated region
    $region6: #{tpu_custom_call.1} parent=1 // pred_check
      _
    $region7: #{tpu_custom_call.1} parent=1 // pred_check_branch
      %27 = sbr.rel (0) target = $region9
    $region8: #{tpu_custom_call.1} parent=1 // pred_region
      %s29 = ssub.s32 1536, 1536
      %30 = vsyncadd [#allocation8], %s29
      %s31 = sshll.u32 [#allocation7], 4
      %s32 = int_to_ptr.vmem [resolvable:$true] %s31
      %37 = dma.hbm_to_vmem [thread:$0]  %s2, 1536, %s32, [#allocation8], 384, 384, 24
    $region9: #{tpu_custom_call.1} parent=1 // pred_fallthru
      _
    // Predicated region
    $region10: #{tpu_custom_call.1} parent=1 // pred_check
      _
    $region11: #{tpu_custom_call.1} parent=1 // pred_check_branch
      %39 = sbr.rel (0) target = $region13
    $region12: #{tpu_custom_call.1} parent=1 // pred_region
      _
    $region13: #{tpu_custom_call.1} parent=1 // pred_fallthru
      _
    // Predicated region
    $region14: #{tpu_custom_call.1} parent=1 // pred_check
      _
    $region15: #{tpu_custom_call.1} parent=1 // pred_check_branch
      %41 = sbr.rel (0) target = $region17
    $region16: #{tpu_custom_call.1} parent=1 // pred_region
      %42 = dma.done [#allocation5], 128
    $region17: #{tpu_custom_call.1} parent=1 // pred_fallthru
      _
    // Predicated region
    $region18: #{tpu_custom_call.1} parent=1 // pred_check
      _
    $region19: #{tpu_custom_call.1} parent=1 // pred_check_branch
      %44 = sbr.rel (0) target = $region21
    $region20: #{tpu_custom_call.1} parent=1 // pred_region
      %45 = dma.done [#allocation8], 1536
    $region21: #{tpu_custom_call.1} parent=1 // pred_fallthru
      _
    %v46 = vld [vmem:[#allocation4] sm:$0xff]
    %v47 = vld [vmem:[#allocation7] sm:$0xff]
    %v48 = vld [vmem:[#allocation7 + $0x8] sm:$0xff]
    %v49 = vld [vmem:[#allocation7 + $0x10] sm:$0xff]
    %v50 = vld [vmem:[#allocation7 + $0x18] sm:$0xff]
    %v51 = vld [vmem:[#allocation7 + $0x20] sm:$0xff]
    %v52 = vld [vmem:[#allocation7 + $0x28] sm:$0xff]
    %v53 = vld [vmem:[#allocation7 + $0x30] sm:$0xff]
    %v54 = vld [vmem:[#allocation7 + $0x38] sm:$0xff]
    %v55 = vld [vmem:[#allocation7 + $0x40] sm:$0xff]
    %v56 = vld [vmem:[#allocation7 + $0x48] sm:$0xff]
    %v57 = vld [vmem:[#allocation7 + $0x50] sm:$0xff]
    %v58 = vld [vmem:[#allocation7 + $0x58] sm:$0xff]
    %v59 = vld [vmem:[%s3] sm:$0x7]
    %v61 = vlaneseq
    %v62 = vshrl.u32 %v61, 7
    %v63 = vsub.s32 0, %v62
    %v64 = vrot.slane %v59, %v63
    %v65 = vlaneseq
    %v66 = vshrl.u32 %v65, 7
    %v67 = vsub.s32 1, %v66
    %v68 = vrot.slane %v59, %v67
    %v69 = vlaneseq
    %v70 = vshrl.u32 %v69, 7
    %v71 = vsub.s32 2, %v70
    %v72 = vrot.slane %v59, %v71
    %vm76 = vcmask 261120
    %v78 = vsel %vm76, %v46, 0
    %80 = vmatprep.subr.mxu0 %v48
    %81 = vmatpush1.msra.mxu0 %v47
    %82 = vmatprep.subr.mxu0 %v51
    %83 = vmatpush1.msra.mxu0 %v50
    %84 = vmatprep.subr.mxu0 %v54
    %85 = vmatpush1.msra.mxu0 %v53
    %86 = vmatprep.subr.mxu0 %v57
    %87 = vmatpush1.msra.mxu0 %v56
    %88 = vmatprep.subr.mxu0 0.0
    %89 = vmatpush1.msra.mxu0 0.0
    %90 = vmatprep.subr.mxu0 0.0
    %91 = vmatpush1.msra.mxu0 0.0
    %92 = vmatprep.subr.mxu0 0.0
    %93 = vmatpush1.msra.mxu0 0.0
    %94 = vmatprep.subr.mxu0 0.0
    %95 = vmatpush1.msra.mxu0 0.0
    %96 = vmatprep.subr.mxu0 0.0
    %97 = vmatpush1.msra.mxu0 0.0
    %98 = vmatprep.subr.mxu0 0.0
    %99 = vmatpush1.msra.mxu0 0.0
    %100 = vmatprep.subr.mxu0 0.0
    %101 = vmatpush1.msra.mxu0 0.0
    %102 = vmatprep.subr.mxu0 0.0
    %103 = vmatpush1.msra.mxu0 0.0
    %104 = vmatprep.subr.mxu0 0.0
    %105 = vmatpush1.msra.mxu0 0.0
    %106 = vmatprep.subr.mxu0 0.0
    %107 = vmatpush1.msra.mxu0 0.0
    %108 = vmatprep.subr.mxu0 0.0
    %109 = vmatpush1.msra.mxu0 0.0
    %110 = vmatprep.subr.mxu0 0.0
    %111 = vmatpush1.msra.mxu0 0.0
    %112 = vmatprep.subr.mxu0 0.0
    %113 = vmatpush1.msra.mxu0 0.0
    %114 = vmatprep.subr.mxu0 0.0
    %115 = vmatpush1.msra.mxu0 0.0
    %116 = vmatprep.subr.mxu0 0.0
    %117 = vmatpush1.msra.mxu0 0.0
    %118 = vmatprep.subr.mxu0 0.0
    %119 = vmatpush1.msra.mxu0 0.0
    %120 = vmatprep.subr.mxu0 0.0
    %121 = vmatpush1.msra.mxu0 0.0
    %122 = vmatprep.subr.mxu0 0.0
    %123 = vmatpush1.msra.mxu0 0.0
    %124 = vmatprep.subr.mxu0 0.0
    %125 = vmatpush1.msra.mxu0 0.0
    %126 = vmatprep.subr.mxu0 0.0
    %127 = vmatpush1.msra.mxu0 0.0
    %128 = vmatprep.subr.mxu0 0.0
    %129 = vmatpush1.msra.mxu0 0.0
    %130 = vmatprep.subr.mxu0 0.0
    %131 = vmatpush1.msra.mxu0 0.0
    %132 = vmatprep.subr.mxu0 0.0
    %133 = vmatpush1.msra.mxu0 0.0
    %134 = vmatprep.subr.mxu0 0.0
    %135 = vmatpush1.msra.mxu0 0.0
    %136 = vmatprep.subr.mxu0 0.0
    %137 = vmatpush1.msra.mxu0 0.0
    %138 = vmatprep.subr.mxu0 0.0
    %139 = vmatpush1.msra.mxu0 0.0
    %140 = vmatprep.subr.mxu0 0.0
    %141 = vmatpush1.msra.mxu0 0.0
    %142 = vmatprep.subr.mxu0 0.0
    %143 = vmatpush1.msra.mxu0 0.0
    %144 = vmatprep.mubr.f32.mxu0 0.0
    %145 = vmatmul.mubr.f32.gmra.mrb[0].mxu0 %v78
    %v146 = vpop.f32.mrb[0].mxu0
    %v147 = vadd.f32 %v64, %v146
    %v148 = vpop.f32.mrb[0].mxu0
    %v149 = vadd.f32 %v68, %v148
    %150 = vdwg.mxu0
    %151 = vmatprep.subr.mxu0 0.0
    %152 = vmatpush1.msra.mxu0 %v49
    %153 = vmatprep.subr.mxu0 0.0
    %154 = vmatpush1.msra.mxu0 %v52
    %155 = vmatprep.subr.mxu0 0.0
    %156 = vmatpush1.msra.mxu0 %v55
    %157 = vmatprep.subr.mxu0 0.0
    %158 = vmatpush1.msra.mxu0 %v58
    %159 = vmatprep.subr.mxu0 0.0
    %160 = vmatpush1.msra.mxu0 0.0
    %161 = vmatprep.subr.mxu0 0.0
    %162 = vmatpush1.msra.mxu0 0.0
    %163 = vmatprep.subr.mxu0 0.0
    %164 = vmatpush1.msra.mxu0 0.0
    %165 = vmatprep.subr.mxu0 0.0
    %166 = vmatpush1.msra.mxu0 0.0
    %167 = vmatprep.subr.mxu0 0.0
    %168 = vmatpush1.msra.mxu0 0.0
    %169 = vmatprep.subr.mxu0 0.0
    %170 = vmatpush1.msra.mxu0 0.0
    %171 = vmatprep.subr.mxu0 0.0
    %172 = vmatpush1.msra.mxu0 0.0
    %173 = vmatprep.subr.mxu0 0.0
    %174 = vmatpush1.msra.mxu0 0.0
    %175 = vmatprep.subr.mxu0 0.0
    %176 = vmatpush1.msra.mxu0 0.0
    %177 = vmatprep.subr.mxu0 0.0
    %178 = vmatpush1.msra.mxu0 0.0
    %179 = vmatprep.subr.mxu0 0.0
    %180 = vmatpush1.msra.mxu0 0.0
    %181 = vmatprep.subr.mxu0 0.0
    %182 = vmatpush1.msra.mxu0 0.0
    %183 = vmatprep.subr.mxu0 0.0
    %184 = vmatpush1.msra.mxu0 0.0
    %185 = vmatprep.subr.mxu0 0.0
    %186 = vmatpush1.msra.mxu0 0.0
    %187 = vmatprep.subr.mxu0 0.0
    %188 = vmatpush1.msra.mxu0 0.0
    %189 = vmatprep.subr.mxu0 0.0
    %190 = vmatpush1.msra.mxu0 0.0
    %191 = vmatprep.subr.mxu0 0.0
    %192 = vmatpush1.msra.mxu0 0.0
    %193 = vmatprep.subr.mxu0 0.0
    %194 = vmatpush1.msra.mxu0 0.0
    %195 = vmatprep.subr.mxu0 0.0
    %196 = vmatpush1.msra.mxu0 0.0
    %197 = vmatprep.subr.mxu0 0.0
    %198 = vmatpush1.msra.mxu0 0.0
    %199 = vmatprep.subr.mxu0 0.0
    %200 = vmatpush1.msra.mxu0 0.0
    %201 = vmatprep.subr.mxu0 0.0
    %202 = vmatpush1.msra.mxu0 0.0
    %203 = vmatprep.subr.mxu0 0.0
    %204 = vmatpush1.msra.mxu0 0.0
    %205 = vmatprep.subr.mxu0 0.0
    %206 = vmatpush1.msra.mxu0 0.0
    %207 = vmatprep.subr.mxu0 0.0
    %208 = vmatpush1.msra.mxu0 0.0
    %209 = vmatprep.subr.mxu0 0.0
    %210 = vmatpush1.msra.mxu0 0.0
    %211 = vmatprep.subr.mxu0 0.0
    %212 = vmatpush1.msra.mxu0 0.0
    %213 = vmatprep.subr.mxu0 0.0
    %214 = vmatpush1.msra.mxu0 0.0
    %215 = vmatprep.mubr.f32.mxu0 0.0
    %216 = vmatmul.mubr.f32.gmra.mrb[0].mxu0 %v78
    %v217 = vpop.f32.mrb[0].mxu0
    %v218 = vadd.f32 %v72, %v217
    %v219 = vpop.f32.mrb[0].mxu0
    %220 = vdwg.mxu0
    %v221 = vlaneseq
    %v222 = vand.u32 %v221, 127
    %vm223 = vcmp.lt.s32.totalorder %v222, 16
    %s224 = sld [smem:[#allocation3]]
    %p225 = scmp.ne.s32.totalorder %s224, 0
    %226 = vmax.xlane.f32.xlu0 %v147
    %v227 = vpop.xlane.xlu0 %226
    %v228 = vsub.f32 %v147, %v227
    %v229 = vmul.f32 %v228, 1.442695
    %v230 = vpow.pop %v229
    %v231 = vsel %vm223, %v230, 0.0
    %232 = vadd.xlane.f32.xlu0 %v231
    %v233 = vpop.xlane.xlu0 %232
    %v234 = vrcp.pop %v233
    %v235 = vmul.f32 %v231, %v234
    %s236 = scalar_select %p225, 1, 0
    %v237 = vstv %s236
    %vm238 = vcmp.eq.s32.totalorder %v237, 1
    %v239 = vsel %vm238, %v235, %v147
    %v240 = vadd.f32 %v239, 0.0
    %s241 = sld [smem:[#allocation3 + $0x1]]
    %p242 = scmp.ne.s32.totalorder %s241, 0
    %243 = vmax.xlane.f32.xlu0 %v149
    %v244 = vpop.xlane.xlu0 %243
    %v245 = vsub.f32 %v149, %v244
    %v246 = vmul.f32 %v245, 1.442695
    %v247 = vpow.pop %v246
    %v248 = vsel %vm223, %v247, 0.0
    %249 = vadd.xlane.f32.xlu0 %v248
    %v250 = vpop.xlane.xlu0 %249
    %v251 = vrcp.pop %v250
    %v252 = vmul.f32 %v248, %v251
    %s253 = scalar_select %p242, 1, 0
    %v254 = vstv %s253
    %vm255 = vcmp.eq.s32.totalorder %v254, 1
    %v256 = vsel %vm255, %v252, %v149
    %v257 = vadd.f32 %v240, %v256
    %s258 = sld [smem:[#allocation3 + $0x2]]
    %p259 = scmp.ne.s32.totalorder %s258, 0
    %260 = vmax.xlane.f32.xlu0 %v218
    %v261 = vpop.xlane.xlu0 %260
    %v262 = vsub.f32 %v218, %v261
    %v263 = vmul.f32 %v262, 1.442695
    %v264 = vpow.pop %v263
    %v265 = vsel %vm223, %v264, 0.0
    %266 = vadd.xlane.f32.xlu0 %v265
    %v267 = vpop.xlane.xlu0 %266
    %v268 = vrcp.pop %v267
    %v269 = vmul.f32 %v265, %v268
    %s270 = scalar_select %p259, 1, 0
    %v271 = vstv %s270
    %vm272 = vcmp.eq.s32.totalorder %v271, 1
    %v273 = vsel %vm272, %v269, %v218
    %v274 = vadd.f32 %v257, %v273
    %v275 = vmul.f32 %v274, 0.33333334
    %276 = vst [vmem:[#allocation9] sm:$0xff] %v275
    // Predicated region
    $region22: #{tpu_custom_call.1} parent=1 // pred_check
      _
    $region23: #{tpu_custom_call.1} parent=1 // pred_check_branch
      %278 = sbr.rel (0) target = $region25
    $region24: #{tpu_custom_call.1} parent=1 // pred_region
      %s280 = ssub.s32 128, 128
      %281 = vsyncadd [#allocation6], %s280
      %s283 = sshll.u32 [#allocation9], 4
      %s284 = int_to_ptr.vmem [resolvable:$true] %s283
      %286 = dma.vmem_to_hbm [thread:$0]  %s284, 128, %s4, [#allocation6]
    $region25: #{tpu_custom_call.1} parent=1 // pred_fallthru
      _
    // Predicated region
    $region26: #{tpu_custom_call.1} parent=1 // pred_check
      _
    $region27: #{tpu_custom_call.1} parent=1 // pred_check_branch
      %288 = sbr.rel (0) target = $region29
    $region28: #{tpu_custom_call.1} parent=1 // pred_region
      %289 = dma.done [#allocation6], 128
    $region29: #{tpu_custom_call.1} parent=1 // pred_fallthru
      _
    %290 = vsyncpa [#allocation5], 1
    %291 = vsyncpa [#allocation8], 1
    %292 = vsyncpa [#allocation6], 1

</llo_original>
